<compile_context>
chip_gen: v6e
topology: v6e:2x2x1
jax: 0.10.0
libtpu: 0.0.40
codegen_flags: <defaults>
</compile_context>

<pallas_src>
import jax
import jax.numpy as jnp
from jax.experimental import pallas as pl
from jax.experimental.pallas import tpu as pltpu

_LANES = 128
_MIN_PALLAS_BYTES = 256 * 1024        # below this, let XLA fuse (launch-bound regime)
_SINGLE_BLOCK_MAX_BYTES = 512 * 1024  # whole-array-in-VMEM (no pipelining) cutoff


def _abs_add_kernel(x_ref, o_ref):
    x = x_ref[...]
    o_ref[...] = x + jnp.abs(x)


def _pick_tile_rows():
    """Per-generation tile height (rows of 128 lanes). Multiple of 32."""
    try:
        kind = jax.devices()[0].device_kind.lower()
    except Exception:  # pragma: no cover - defensive
        kind = ""
    if "v7" in kind or "7x" in kind:
        # v7x: 4 MiB f32 blocks; 3 in-bufs + 2 out-bufs = 20 MiB < 32 MiB scoped default.
        return 8192
    # v5e / v6e (and unknown): 2 MiB f32 blocks; 3+2 bufs = 10 MiB < 16 MiB (v5e default).
    return 4096


def _buffered_in_spec(block_shape, index_map):
    """Input BlockSpec with a 3-deep pipeline; fall back if unsupported."""
    try:
        return pl.BlockSpec(block_shape, index_map, pipeline_mode=pl.Buffered(3))
    except (TypeError, AttributeError):
        return pl.BlockSpec(block_shape, index_map)


def view_share_op(x, new_shape, *, min_pallas_bytes=_MIN_PALLAS_BYTES):
    """Computes reshape(x, new_shape) + reshape(|x|, new_shape)."""
    n = x.size
    itemsize = jnp.dtype(x.dtype).itemsize
    nbytes = n * itemsize

    # ---- Tiny or lane-ragged inputs: fused XLA is strictly better ----------
    # (1 HBM read + 1 HBM write, no custom-call dispatch, fuses into neighbors)
    if nbytes < min_pallas_bytes or n % _LANES != 0:
        return jnp.reshape(x, new_shape) + jnp.reshape(jnp.abs(x), new_shape)

    cost = pl.CostEstimate(
        flops=2 * n, transcendentals=0, bytes_accessed=2 * nbytes
    )

    rows = n // _LANES
    x2d = jnp.reshape(x, (rows, _LANES))  # row-major metadata reshape, free

    # ---- Small: single ungridded lane-dense VMEM block ----------------------
    if nbytes <= _SINGLE_BLOCK_MAX_BYTES:
        y2d = pl.pallas_call(
            _abs_add_kernel,
            out_shape=jax.ShapeDtypeStruct((rows, _LANES), x.dtype),
            in_specs=[pl.BlockSpec(memory_space=pltpu.MemorySpace.VMEM)],
            out_specs=pl.BlockSpec(memory_space=pltpu.MemorySpace.VMEM),
            cost_estimate=cost,
        )(x2d)
        return jnp.reshape(y2d, new_shape)

    # ---- Large: pipelined tiled path, ragged last block masked by Pallas ----
    tile_rows = _pick_tile_rows()
    grid = (pl.cdiv(rows, tile_rows),)  # no jnp.pad / no output slice needed

    y2d = pl.pallas_call(
        _abs_add_kernel,
        out_shape=jax.ShapeDtypeStruct((rows, _LANES), x.dtype),
        grid=grid,
        in_specs=[_buffered_in_spec((tile_rows, _LANES), lambda i: (i, 0))],
        out_specs=pl.BlockSpec((tile_rows, _LANES), lambda i: (i, 0)),
        compiler_params=pltpu.CompilerParams(
            # On v7x this lets the row range shard across both TensorCores;
            # no-op on single-TC v5e/v6e.
            dimension_semantics=("parallel",),
        ),
        cost_estimate=cost,
    )(x2d)

    return jnp.reshape(y2d, new_shape)


def view_share_op_ref(x, new_shape):
    # Pure-JAX reference matching the PyTorch module exactly.
    return jnp.reshape(x, new_shape) + jnp.reshape(jnp.abs(x), new_shape)


if __name__ == "__main__":
    key = jax.random.PRNGKey(0)

    # Module's test shape: (2, 4, 16, 16) -> reshape to (2, 4, 256).
    x = jax.random.normal(key, (2, 4, 16, 16), dtype=jnp.float32)
    new_shape = (2, 4, 256)
    ref = view_share_op_ref(x, new_shape)

    # Force the Pallas path (min_pallas_bytes=0) so the kernel itself is
    # exercised and validated on-device for the module's shape.
    out = jax.block_until_ready(view_share_op(x, new_shape, min_pallas_bytes=0))
    assert out.shape == tuple(new_shape), (out.shape, new_shape)
    assert out.dtype == x.dtype
    assert jnp.allclose(out, ref, atol=1e-6, rtol=1e-6), "pallas path mismatch"

    # Default behaviour for this tiny input is the fused-XLA bypass; check it too.
    out_bypass = jax.block_until_ready(view_share_op(x, new_shape))
    assert jnp.allclose(out_bypass, ref, atol=1e-6, rtol=1e-6), "bypass path mismatch"

    # Exercise the pipelined tiled fallback with a ragged last grid block
    # (5120 rows of 128 lanes, tile 4096/8192 rows -> masked partial block).
    x_big = jax.random.normal(jax.random.PRNGKey(1), (2, 4, 640, 128), dtype=jnp.float32)
    ns_big = (2, 4, 640 * 128)
    out_big = jax.block_until_ready(view_share_op(x_big, ns_big))
    ref_big = view_share_op_ref(x_big, ns_big)
    assert jnp.allclose(out_big, ref_big, atol=1e-6, rtol=1e-6), "tiled path mismatch"

    print("KERNEL_OK")
</pallas_src>

<mosaic_0001>
module attributes {stable_mosaic.version = 11 : i64} {
  func.func @_abs_add_kernel(%arg0: memref<16x128xf32, #tpu.memory_space<vmem>>, %arg1: memref<16x128xf32, #tpu.memory_space<vmem>>) attributes {dimension_semantics = [], scalar_prefetch = 0 : i64, scratch_operands = 0 : i64, tpu.core_type = #tpu.core_type<tc>} {
    %c0 = arith.constant 0 : index
    %c0_0 = arith.constant 0 : index
    %0 = vector.load %arg0[%c0, %c0_0] : memref<16x128xf32, #tpu.memory_space<vmem>>, vector<16x128xf32>
    %1 = math.absf %0 : vector<16x128xf32>
    %2 = arith.addf %0, %1 : vector<16x128xf32>
    %c0_1 = arith.constant 0 : index
    %c0_2 = arith.constant 0 : index
    %3 = vector.load %arg1[%c0_1, %c0_2] : memref<16x128xf32, #tpu.memory_space<vmem>>, vector<16x128xf32>
    tpu.vector_store %arg1[%c0_1, %c0_2], %2 {strides = array<i32>} : memref<16x128xf32, #tpu.memory_space<vmem>>, vector<16x128xf32>,
    return
  }
}

</mosaic_0001>

<llo_original>
// kernel: tpu_custom_call.1
$region0: #{tpu_custom_call.1}
  #allocation0 [shape = 'u32[]', space=smem, size = 0x4, offset = 0x4, fixed_abs, tag = 'smem constant byte address 0x4 - core index']
  #allocation1 [shape = 'u32[144,128]{1,0:T(1,128)}', space=vmem, size = 0x12000, scoped, tag = 'internal scratch']
  %s0 = inlined_call_operand.hbm [shape: f32[16,128], index: 0, kind: input, shape index: {}]
  %s1 = inlined_call_operand.hbm [shape: f32[16,128], index: 1, kind: output, shape index: {}]
  %s2 = sld [smem:[#allocation0]]
  $region18: #{tpu_custom_call.1} parent=0
    _
  %s4 = ssub.s32 1, %s2
  %s5 = scalar_select 0, %s4, %s2
  $region1: #{tpu_custom_call.1} parent=0
    #allocation2 [shape = 'u8[8192]{0}', space=vmem, size = 0x2000, scoped, tag = 'input window, operand 0, single buffered']
    #allocation3 [shape = 's32[1]{0}', space=sflag, size = 0x4, scoped, tag = 'scoped memory for tpu_custom_call.1']
    #allocation4 [shape = 's32[1]{0}', space=sflag, size = 0x4, scoped, tag = 'scoped memory for tpu_custom_call.1']
    #allocation5 [shape = 'u8[8192]{0}', space=vmem, size = 0x2000, scoped, tag = 'output window, operand 0, single buffered']
    %6 = vsyncpa [#allocation3], 0
    %7 = vsyncpa [#allocation4], 0
    // Predicated region
    $region2: #{tpu_custom_call.1} parent=1 // pred_check
      _
    $region3: #{tpu_custom_call.1} parent=1 // pred_check_branch
      %9 = sbr.rel (0) target = $region5
    $region4: #{tpu_custom_call.1} parent=1 // pred_region
      %s11 = ssub.s32 256, 256
      %12 = vsyncadd [#allocation3], %s11
      %s13 = sshll.u32 [#allocation2], 4
      %s14 = int_to_ptr.vmem [resolvable:$true] %s13
      %19 = dma.hbm_to_vmem [thread:$0]  %s0, 256, %s14, [#allocation3], 128, 128, 8
    $region5: #{tpu_custom_call.1} parent=1 // pred_fallthru
      _
    // Predicated region
    $region6: #{tpu_custom_call.1} parent=1 // pred_check
      _
    $region7: #{tpu_custom_call.1} parent=1 // pred_check_branch
      %21 = sbr.rel (0) target = $region9
    $region8: #{tpu_custom_call.1} parent=1 // pred_region
      %22 = dma.done [#allocation3], 256
    $region9: #{tpu_custom_call.1} parent=1 // pred_fallthru
      _
    %v23 = vld [vmem:[#allocation2] sm:$0xff]
    %v24 = vld [vmem:[#allocation2 + $0x8] sm:$0xff]
    %v25 = vand.u32 2147483647, %v23
    %v26 = vand.u32 2147483647, %v24
    %v27 = vadd.f32 %v23, %v25
    %v28 = vadd.f32 %v24, %v26
    %29 = vst [vmem:[#allocation5] sm:$0xff] %v27
    %30 = vst [vmem:[#allocation5 + $0x8] sm:$0xff] %v28
    // Predicated region
    $region10: #{tpu_custom_call.1} parent=1 // pred_check
      _
    $region11: #{tpu_custom_call.1} parent=1 // pred_check_branch
      %32 = sbr.rel (0) target = $region13
    $region12: #{tpu_custom_call.1} parent=1 // pred_region
      %s34 = ssub.s32 256, 256
      %35 = vsyncadd [#allocation4], %s34
      %s36 = sshll.u32 [#allocation5], 4
      %s37 = int_to_ptr.vmem [resolvable:$true] %s36
      %42 = dma.vmem_to_hbm [thread:$0]  %s37, 256, %s1, [#allocation4], 128, 128, 8
    $region13: #{tpu_custom_call.1} parent=1 // pred_fallthru
      _
    // Predicated region
    $region14: #{tpu_custom_call.1} parent=1 // pred_check
      _
    $region15: #{tpu_custom_call.1} parent=1 // pred_check_branch
      %44 = sbr.rel (0) target = $region17
    $region16: #{tpu_custom_call.1} parent=1 // pred_region
      %45 = dma.done [#allocation4], 256
    $region17: #{tpu_custom_call.1} parent=1 // pred_fallthru
      _
    %46 = vsyncpa [#allocation3], 1
    %47 = vsyncpa [#allocation4], 1

</llo_original>
